<compile_context>
chip_gen: v7x
topology: tpu7x:2x2x1
jax: 0.10.0
libtpu: 0.0.40
codegen_flags: <defaults>
</compile_context>

<pallas_src>
import jax
import jax.numpy as jnp
from jax.experimental import pallas as pl
from jax.experimental.pallas import tpu as pltpu

_LANE = 128
_TARGET_TILE_BYTES = 4 * 1024 * 1024  # per input tile; x2 for double buffering


def _choose_tiles(rows, hw, itemsize):
    """Pick (tile_rows, tile_hw) so one input tile is ~a few MiB (lane-padded)."""
    padded_hw = pl.cdiv(hw, _LANE) * _LANE
    row_bytes = padded_hw * itemsize  # lane-padded bytes of one full row

    # Row-axis tiling: full extent when small, else multiples of 128 rows
    # (keeps the lane-dense output block legal: divisible by 128).
    if rows * row_bytes <= _TARGET_TILE_BYTES or rows < 2 * _LANE:
        tile_rows = rows
    else:
        by_budget = max(1, _TARGET_TILE_BYTES // row_bytes)
        tile_rows = max(_LANE, (min(by_budget, rows) // _LANE) * _LANE)

    # H*W-axis tiling: only chunk when a full-hw slab still blows the budget.
    tile_bytes = tile_rows * row_bytes
    if tile_bytes <= _TARGET_TILE_BYTES or hw <= _LANE:
        tile_hw = hw
    else:
        n_chunks = pl.cdiv(tile_bytes, _TARGET_TILE_BYTES)
        tile_hw = max(_LANE, (padded_hw // n_chunks // _LANE) * _LANE)

    return tile_rows, tile_hw


def _make_kernel(hw, tile_rows, tile_hw, n_hw):
    inv_hw = 1.0 / float(hw)
    needs_mask = (hw % tile_hw) != 0

    if n_hw == 1:
        # Whole reduction axis in one block: no accumulator needed.
        def kernel(x_ref, o_ref):
            s = jnp.sum(x_ref[...], axis=-1, dtype=jnp.float32, keepdims=True)
            o_ref[...] = (s * inv_hw).T.astype(o_ref.dtype)  # lane-dense (1, tile_rows)

        return kernel, []

    def kernel(x_ref, o_ref, acc_ref):
        j = pl.program_id(1)

        @pl.when(j == 0)
        def _init():
            acc_ref[...] = jnp.zeros_like(acc_ref)

        x = x_ref[...]
        if needs_mask:
            col = j * tile_hw + jax.lax.broadcasted_iota(jnp.int32, x.shape, 1)
            x = jnp.where(col < hw, x, jnp.zeros_like(x))
        acc_ref[...] += jnp.sum(x, axis=-1, dtype=jnp.float32, keepdims=True)

        @pl.when(j == n_hw - 1)
        def _finalize():
            o_ref[...] = (acc_ref[...] * inv_hw).T.astype(o_ref.dtype)

    return kernel, [pltpu.VMEM((tile_rows, 1), jnp.float32)]


def global_avg_pool2d(x):
    """Equivalent of F.avg_pool2d(x, kernel_size=x.shape[2:]) for NCHW input."""
    N, C, H, W = x.shape
    rows = N * C
    hw = H * W
    x2d = x.reshape(rows, hw)

    itemsize = jnp.dtype(x.dtype).itemsize
    tile_rows, tile_hw = _choose_tiles(rows, hw, itemsize)
    n_row = pl.cdiv(rows, tile_rows)
    n_hw = pl.cdiv(hw, tile_hw)

    kernel, scratch = _make_kernel(hw, tile_rows, tile_hw, n_hw)

    out = pl.pallas_call(
        kernel,
        out_shape=jax.ShapeDtypeStruct((1, rows), x.dtype),
        grid_spec=pltpu.PrefetchScalarGridSpec(
            num_scalar_prefetch=0,
            grid=(n_row, n_hw),  # reduction (hw) axis last
            in_specs=[pl.BlockSpec((tile_rows, tile_hw), lambda i, j: (i, j))],
            out_specs=pl.BlockSpec((1, tile_rows), lambda i, j: (0, i)),
            scratch_shapes=scratch,
        ),
        compiler_params=pltpu.CompilerParams(
            dimension_semantics=("parallel", "arbitrary"),
            vmem_limit_bytes=32 * 1024 * 1024,
        ),
    )(x2d)

    return out.reshape(N, C, 1, 1)


if __name__ == "__main__":
    key = jax.random.PRNGKey(0)

    # Small sanity check (matches the PyTorch module's forward semantics).
    N, C, H, W = 2, 4, 16, 16
    x = jax.random.normal(key, (N, C, H, W), dtype=jnp.float32)
    out = jax.block_until_ready(global_avg_pool2d(x))
    ref = jnp.mean(x, axis=(2, 3), keepdims=True)
    assert out.shape == (N, C, 1, 1), out.shape
    assert jnp.allclose(out, ref, atol=1e-5, rtol=1e-5), "mismatch vs reference"

    # Larger check that exercises the tiled / double-buffered row path.
    N2, C2, H2, W2 = 16, 512, 14, 14
    x2 = jax.random.normal(jax.random.PRNGKey(1), (N2, C2, H2, W2), dtype=jnp.float32)
    out2 = jax.block_until_ready(global_avg_pool2d(x2))
    ref2 = jnp.mean(x2, axis=(2, 3), keepdims=True)
    assert out2.shape == (N2, C2, 1, 1), out2.shape
    assert jnp.allclose(out2, ref2, atol=1e-5, rtol=1e-5), "mismatch vs reference (tiled)"

    print("KERNEL_OK")
</pallas_src>

<mosaic_0001>
module attributes {stable_mosaic.version = 11 : i64} {
  func.func @kernel(%arg0: i32, %arg1: i32, %arg2: memref<8x256xf32, #tpu.memory_space<vmem>>, %arg3: memref<1x8xf32, #tpu.memory_space<vmem>>) attributes {dimension_semantics = [#tpu.dimension_semantics<parallel>, #tpu.dimension_semantics<arbitrary>], iteration_bounds = array<i64: 1, 1>, scalar_prefetch = 0 : i64, scratch_operands = 0 : i64, tpu.core_type = #tpu.core_type<tc>, window_params = [{transform_indices = @transform_0, window_bounds = array<i64: 8, 256>}, {transform_indices = @transform_1, window_bounds = array<i64: 1, 8>}]} {
    %c0 = arith.constant 0 : index
    %c0_0 = arith.constant 0 : index
    %0 = vector.load %arg2[%c0, %c0_0] : memref<8x256xf32, #tpu.memory_space<vmem>>, vector<8x256xf32>
    %cst = arith.constant dense<0.000000e+00> : vector<8xf32>
    %1 = vector.multi_reduction <add>, %0, %cst [1] : vector<8x256xf32> to vector<8xf32>
    %2 = vector.shape_cast %1 : vector<8xf32> to vector<8x1xf32>
    %cst_1 = arith.constant 3.906250e-03 : f32
    %3 = vector.broadcast %cst_1 : f32 to vector<8x1xf32>
    %4 = arith.mulf %2, %3 : vector<8x1xf32>
    %5 = tpu.transpose %4, [1, 0] : vector<8x1xf32> -> vector<1x8xf32>
    %c0_2 = arith.constant 0 : index
    %c0_3 = arith.constant 0 : index
    %6 = vector.load %arg3[%c0_2, %c0_3] : memref<1x8xf32, #tpu.memory_space<vmem>>, vector<1x8xf32>
    tpu.vector_store %arg3[%c0_2, %c0_3], %5 {strides = array<i32>} : memref<1x8xf32, #tpu.memory_space<vmem>>, vector<1x8xf32>,
    return
  }
  func.func @transform_0(%arg0: i32, %arg1: i32) -> (i32, i32) {
    %c0_i32 = arith.constant 0 : i32
    return %arg0, %arg1 : i32, i32
  }
  func.func @transform_1(%arg0: i32, %arg1: i32) -> (i32, i32) {
    %c0_i32 = arith.constant 0 : i32
    %c0_i32_0 = arith.constant 0 : i32
    return %c0_i32, %arg0 : i32, i32
  }
}

</mosaic_0001>

<llo_original>
// kernel: tpu_custom_call.1
$region0: #{tpu_custom_call.1}
  #allocation0 [shape = 'u32[]', space=smem, size = 0x4, offset = 0x4, fixed_abs, tag = 'smem constant byte address 0x4 - core index']
  #allocation1 [shape = 'u32[144,128]{1,0:T(1,128)}', space=vmem, size = 0x12000, scoped, tag = 'internal scratch']
  %s0 = inlined_call_operand.hbm [shape: f32[8,256], index: 0, kind: input, shape index: {}]
  %s1 = inlined_call_operand.hbm [shape: f32[1,8], index: 1, kind: output, shape index: {}]
  %s2 = sld [smem:[#allocation0]]
  $region18: #{tpu_custom_call.1} parent=0
    _
  %s4 = ssub.s32 1, %s2
  %s5 = scalar_select 0, %s4, %s2
  $region1: #{tpu_custom_call.1} parent=0
    #allocation2 [shape = 'u8[8192]{0}', space=vmem, size = 0x2000, scoped, tag = 'input window, operand 0, single buffered']
    #allocation3 [shape = 's32[1]{0}', space=sflag, size = 0x4, scoped, tag = 'scoped memory for tpu_custom_call.1']
    #allocation4 [shape = 's32[1]{0}', space=sflag, size = 0x4, scoped, tag = 'scoped memory for tpu_custom_call.1']
    #allocation5 [shape = 'u8[512]{0}', space=vmem, size = 0x400, scoped, tag = 'output window, operand 0, single buffered']
    %6 = vsyncpa [#allocation3], 0
    %7 = vsyncpa [#allocation4], 0
    // Predicated region
    $region2: #{tpu_custom_call.1} parent=1 // pred_check
      _
    $region3: #{tpu_custom_call.1} parent=1 // pred_check_branch
      %9 = sbr.rel (0) target = $region5
    $region4: #{tpu_custom_call.1} parent=1 // pred_region
      %s11 = ssub.s32 256, 256
      %12 = vsyncadd [#allocation3], %s11
      %s14 = sshll.u32 [#allocation2], 4
      %s15 = int_to_ptr.vmem [resolvable:$true] %s14
      %17 = dma.hbm_to_vmem [thread:$0]  %s0, 256, %s15, [#allocation3]
    $region5: #{tpu_custom_call.1} parent=1 // pred_fallthru
      _
    // Predicated region
    $region6: #{tpu_custom_call.1} parent=1 // pred_check
      _
    $region7: #{tpu_custom_call.1} parent=1 // pred_check_branch
      %19 = sbr.rel (0) target = $region9
    $region8: #{tpu_custom_call.1} parent=1 // pred_region
      %20 = dma.done [#allocation3], 256
    $region9: #{tpu_custom_call.1} parent=1 // pred_fallthru
      _
    %v21 = vld [vmem:[#allocation2] sm:$0xff]
    %v22 = vld [vmem:[#allocation2 + $0x8] sm:$0xff]
    %v23 = vadd.f32 %v21, %v22
    %24 = vadd.xlane.f32.xlu0 %v23
    %v25 = vpop.xlane.xlu0 %24
    %v26 = vmul.f32 %v25, 0.00390625
    %27 = vxpose.xlu0.b32.start [1/16] %v26, 128
    %28 = vxpose.xlu0.b32.cont [2/16] 0.0, 128
    %29 = vxpose.xlu0.b32.cont [3/16] 0.0, 128
    %30 = vxpose.xlu0.b32.cont [4/16] 0.0, 128
    %31 = vxpose.xlu0.b32.cont [5/16] 0.0, 128
    %32 = vxpose.xlu0.b32.cont [6/16] 0.0, 128
    %33 = vxpose.xlu0.b32.cont [7/16] 0.0, 128
    %34 = vxpose.xlu0.b32.cont [8/16] 0.0, 128
    %35 = vxpose.xlu0.b32.cont [9/16] 0.0, 128
    %36 = vxpose.xlu0.b32.cont [10/16] 0.0, 128
    %37 = vxpose.xlu0.b32.cont [11/16] 0.0, 128
    %38 = vxpose.xlu0.b32.cont [12/16] 0.0, 128
    %39 = vxpose.xlu0.b32.cont [13/16] 0.0, 128
    %40 = vxpose.xlu0.b32.cont [14/16] 0.0, 128
    %41 = vxpose.xlu0.b32.cont [15/16] 0.0, 128
    %42 = vxpose.xlu0.b32.end [16/16] 0.0, 128
    %v43 = vpop.trf.xlu0
    %v44 = vpop.trf.xlu0
    %v45 = vpop.trf.xlu0
    %v46 = vpop.trf.xlu0
    %v47 = vpop.trf.xlu0
    %v48 = vpop.trf.xlu0
    %v49 = vpop.trf.xlu0
    %v50 = vpop.trf.xlu0
    %v51 = vpop.trf.xlu0
    %v52 = vpop.trf.xlu0
    %v53 = vpop.trf.xlu0
    %v54 = vpop.trf.xlu0
    %v55 = vpop.trf.xlu0
    %v56 = vpop.trf.xlu0
    %v57 = vpop.trf.xlu0
    %v58 = vpop.trf.xlu0
    %vm59 = vcmask 57344
    %60 = vst.msk [vmem:[#allocation5] sm:$0x1] %vm59, %v43
    // Predicated region
    $region10: #{tpu_custom_call.1} parent=1 // pred_check
      _
    $region11: #{tpu_custom_call.1} parent=1 // pred_check_branch
      %62 = sbr.rel (0) target = $region13
    $region12: #{tpu_custom_call.1} parent=1 // pred_region
      %s64 = ssub.s32 16, 16
      %65 = vsyncadd [#allocation4], %s64
      %s67 = sshll.u32 [#allocation5], 4
      %s68 = int_to_ptr.vmem [resolvable:$true] %s67
      %70 = dma.vmem_to_hbm [thread:$0]  %s68, 16, %s1, [#allocation4]
    $region13: #{tpu_custom_call.1} parent=1 // pred_fallthru
      _
    // Predicated region
    $region14: #{tpu_custom_call.1} parent=1 // pred_check
      _
    $region15: #{tpu_custom_call.1} parent=1 // pred_check_branch
      %72 = sbr.rel (0) target = $region17
    $region16: #{tpu_custom_call.1} parent=1 // pred_region
      %73 = dma.done [#allocation4], 16
    $region17: #{tpu_custom_call.1} parent=1 // pred_fallthru
      _
    %74 = vsyncpa [#allocation3], 1
    %75 = vsyncpa [#allocation4], 1

</llo_original>
